<compile_context>
chip_gen: v7x
topology: tpu7x:2x2x1
jax: 0.10.0
libtpu: 0.0.40
codegen_flags: <defaults>
</compile_context>

<pallas_src>
import functools

import jax
import jax.numpy as jnp
from jax.experimental import pallas as pl
from jax.experimental.pallas import tpu as pltpu


def _round_up(x, m):
    return ((x + m - 1) // m) * m


def _softplus(v):
    # matches torch.nn.functional.softplus (threshold=20)
    return jnp.where(v > 20.0, v, jnp.log1p(jnp.exp(jnp.minimum(v, 20.0))))


def _policy_kernel(x1_ref, x2_ref, x3_ref, w1_ref, w2_ref, w3_ref, b_ref,
                   fab_ref, out_ref, acc_ref, *, tb, tpc, batch):
    c = pl.program_id(0)          # "parallel" axis (split across TCs on v7x)
    j = pl.program_id(1)          # per-core reduction over batch tiles

    @pl.when(j == 0)
    def _():
        acc_ref[...] = jnp.zeros_like(acc_ref)

    # hidden = relu(x1@W1 + x2@W2 + x3@W3 + b); bf16 operands, f32 accumulation.
    h = jnp.dot(x1_ref[...], w1_ref[...], preferred_element_type=jnp.float32)
    h += jnp.dot(x2_ref[...], w2_ref[...], preferred_element_type=jnp.float32)
    h += jnp.dot(x3_ref[...], w3_ref[...], preferred_element_type=jnp.float32)
    h = jnp.maximum(h + b_ref[...], 0.0)                        # (TB, 128) f32

    # Both heads with a single MXU op: (TB,128) @ (128,2) -> (TB,2).
    heads = jnp.dot(h, fab_ref[...], preferred_element_type=jnp.float32)
    sp = _softplus(heads)                                       # (TB, 2) f32

    row0 = (c * tpc + j) * tb
    tile_sum = jnp.sum(sp, axis=0, keepdims=True)               # (1, 2)

    @pl.when(row0 + tb <= batch)        # fast path: no batch-padding rows
    def _():
        acc_ref[...] += tile_sum

    @pl.when(row0 + tb > batch)         # tail tile: mask out padded rows
    def _():
        row = row0 + jax.lax.broadcasted_iota(jnp.int32, (tb, 1), 0)
        masked = jnp.where(row < batch, sp, 0.0)
        acc_ref[...] += jnp.sum(masked, axis=0, keepdims=True)

    @pl.when(j == tpc - 1)
    def _():
        # Per-core partial sums of softplus; mean + 50 done in the wrapper.
        out_ref[0] = acc_ref[...]


@jax.jit
def _policy_forward(x1, x2, x3, W1, W2, W3, b, fc_alpha, fc_beta):
    B = x1.shape[0]
    E = W1.shape[0]
    T = W3.shape[0]

    ALIGN = 16                      # bf16 sublane packing
    MAX_TB = 1024                   # large tiles keep the DMA pipeline full
    NC = 2 if B >= 64 else 1        # leading parallel axis -> both TCs on v7x
    rows_per_core = _round_up(pl.cdiv(B, NC), ALIGN)
    tpc = pl.cdiv(rows_per_core, MAX_TB)
    TB = _round_up(pl.cdiv(rows_per_core, tpc), ALIGN)
    tpc = pl.cdiv(rows_per_core, TB)
    B_pad = NC * tpc * TB           # padding bounded by tile alignment, not 512

    # Streamed operands in bf16; the batch pad + cast fuse into one producer.
    pad = lambda a: jnp.pad(a.astype(jnp.bfloat16), ((0, B_pad - B), (0, 0)))
    x1p, x2p, x3p = pad(x1), pad(x2), pad(x3)
    w1 = W1.astype(jnp.bfloat16)
    w2 = W2.astype(jnp.bfloat16)
    w3 = W3.astype(jnp.bfloat16)
    bias = b.astype(jnp.float32)
    fab = jnp.concatenate([fc_alpha, fc_beta], axis=1).astype(jnp.float32)  # (128,2)

    kernel = functools.partial(_policy_kernel, tb=TB, tpc=tpc, batch=B)

    # VMEM budget (double-buffered bf16 X tiles + weights + small f32 constants).
    need = (2 * TB * (E + 128 + T) * 2            # X tiles (x2 buffers)
            + 2 * (E + 128 + T) * 128 * 2         # weights (x2 buffers)
            + 2 * (128 * 4 + 128 * 2 * 4)         # bias + fab
            + (1 << 20))                          # headroom
    vmem_limit = int(min(64 << 20, max(32 << 20, 2 * need)))

    out = pl.pallas_call(
        kernel,
        out_shape=jax.ShapeDtypeStruct((NC, 1, 2), jnp.float32),
        grid_spec=pltpu.PrefetchScalarGridSpec(
            num_scalar_prefetch=0,
            grid=(NC, tpc),
            in_specs=[
                pl.BlockSpec((TB, E), lambda c, j: (c * tpc + j, 0)),     # x1 tile
                pl.BlockSpec((TB, 128), lambda c, j: (c * tpc + j, 0)),   # x2 tile
                pl.BlockSpec((TB, T), lambda c, j: (c * tpc + j, 0)),     # x3 tile
                pl.BlockSpec((E, 128), lambda c, j: (0, 0)),              # W1
                pl.BlockSpec((128, 128), lambda c, j: (0, 0)),            # W2
                pl.BlockSpec((T, 128), lambda c, j: (0, 0)),              # W3
                pl.BlockSpec((1, 128), lambda c, j: (0, 0)),              # bias
                pl.BlockSpec((128, 2), lambda c, j: (0, 0)),              # [fc_a|fc_b]
            ],
            out_specs=pl.BlockSpec((1, 1, 2), lambda c, j: (c, 0, 0)),
            scratch_shapes=[pltpu.VMEM((1, 2), jnp.float32)],
        ),
        compiler_params=pltpu.CompilerParams(
            dimension_semantics=("parallel", "arbitrary"),
            vmem_limit_bytes=vmem_limit),
    )(x1p, x2p, x3p, w1, w2, w3, bias, fab)

    totals = out.reshape(NC, 2).sum(axis=0)       # sum of softplus over true batch
    alpha = totals[0] * (1.0 / B) + 50.0
    beta = totals[1] * (1.0 / B) + 50.0
    return alpha, beta


def policy_net_forward(x1, x2, x3, W1, W2, W3, b, fc_alpha, fc_beta):
    # forward() in the module returns a python list [alpha, beta] of scalars.
    alpha, beta = _policy_forward(x1, x2, x3, W1, W2, W3, b, fc_alpha, fc_beta)
    return [alpha, beta]


def init_params(key, num_teacher, embedding_length):
    ks = jax.random.split(key, 6)
    u = lambda k, shape: jax.random.uniform(k, shape, jnp.float32, -0.5, 0.5)
    W1 = u(ks[0], (embedding_length, 128))
    W2 = u(ks[1], (128, 128))
    W3 = u(ks[2], (num_teacher, 128))
    b = u(ks[3], (1, 128))
    fc_alpha = u(ks[4], (128, 1))
    fc_beta = u(ks[5], (128, 1))
    return W1, W2, W3, b, fc_alpha, fc_beta


def reference_forward(x1, x2, x3, W1, W2, W3, b, fc_alpha, fc_beta,
                      input_dtype=None):
    if input_dtype is not None:
        cast = lambda a: a.astype(input_dtype).astype(jnp.float32)
        x1, x2, x3, W1, W2, W3 = map(cast, (x1, x2, x3, W1, W2, W3))
    h = jax.nn.relu(x1 @ W1 + x2 @ W2 + x3 @ W3 + b)
    h = h.reshape(-1, 128)
    alpha = jax.nn.softplus(h @ fc_alpha).mean() + 50.0
    beta = jax.nn.softplus(h @ fc_beta).mean() + 50.0
    return [alpha, beta]


# TODO(synk): take_action/test_policy (Beta/Bernoulli sampling, epsilon decay)
# are host-side control logic outside the forward pass and are not kernelized.

if __name__ == "__main__":
    B = 8               # batch
    E = 32              # embedding_length
    T = 4               # num_teacher

    key = jax.random.PRNGKey(0)
    kp, k1, k2, k3 = jax.random.split(key, 4)
    W1, W2, W3, b, fc_alpha, fc_beta = init_params(kp, T, E)

    x1 = jax.random.normal(k1, (B, E), jnp.float32)
    x2 = jax.random.normal(k2, (B, 128), jnp.float32)
    x3 = jax.random.normal(k3, (B, T), jnp.float32)

    alpha, beta = policy_net_forward(x1, x2, x3, W1, W2, W3, b, fc_alpha, fc_beta)
    jax.block_until_ready(alpha)
    jax.block_until_ready(beta)

    # Reference with the same bf16 rounding as the kernel (moderately tight),
    # plus the pure-f32 reference (loose, bounds bf16 quantization error).
    ref_a16, ref_b16 = reference_forward(x1, x2, x3, W1, W2, W3, b,
                                         fc_alpha, fc_beta,
                                         input_dtype=jnp.bfloat16)
    assert jnp.allclose(alpha, ref_a16, rtol=1e-3, atol=5e-2), (alpha, ref_a16)
    assert jnp.allclose(beta, ref_b16, rtol=1e-3, atol=5e-2), (beta, ref_b16)

    ref_a32, ref_b32 = reference_forward(x1, x2, x3, W1, W2, W3, b,
                                         fc_alpha, fc_beta)
    assert jnp.allclose(alpha, ref_a32, atol=0.5), (alpha, ref_a32)
    assert jnp.allclose(beta, ref_b32, atol=0.5), (beta, ref_b32)

    print("KERNEL_OK")
</pallas_src>

<mosaic_0001>
module attributes {stable_mosaic.version = 11 : i64} {
  func.func @_policy_kernel(%arg0: i32, %arg1: i32, %arg2: memref<16x32xbf16, #tpu.memory_space<vmem>>, %arg3: memref<16x128xbf16, #tpu.memory_space<vmem>>, %arg4: memref<16x4xbf16, #tpu.memory_space<vmem>>, %arg5: memref<32x128xbf16, #tpu.memory_space<vmem>>, %arg6: memref<128x128xbf16, #tpu.memory_space<vmem>>, %arg7: memref<4x128xbf16, #tpu.memory_space<vmem>>, %arg8: memref<1x128xf32, #tpu.memory_space<vmem>>, %arg9: memref<128x2xf32, #tpu.memory_space<vmem>>, %arg10: memref<1x1x2xf32, #tpu.memory_space<vmem>>, %arg11: memref<1x2xf32, #tpu.memory_space<vmem>>) attributes {dimension_semantics = [#tpu.dimension_semantics<parallel>, #tpu.dimension_semantics<arbitrary>], iteration_bounds = array<i64: 1, 1>, scalar_prefetch = 0 : i64, scratch_operands = 1 : i64, tpu.core_type = #tpu.core_type<tc>, window_params = [{transform_indices = @transform_0, window_bounds = array<i64: 16, 32>}, {transform_indices = @transform_1, window_bounds = array<i64: 16, 128>}, {transform_indices = @transform_2, window_bounds = array<i64: 16, 4>}, {pipeline_mode = #tpu.pipeline_mode<synchronous>, transform_indices = @transform_3, window_bounds = array<i64: 32, 128>}, {pipeline_mode = #tpu.pipeline_mode<synchronous>, transform_indices = @transform_4, window_bounds = array<i64: 128, 128>}, {pipeline_mode = #tpu.pipeline_mode<synchronous>, transform_indices = @transform_5, window_bounds = array<i64: 4, 128>}, {pipeline_mode = #tpu.pipeline_mode<synchronous>, transform_indices = @transform_6, window_bounds = array<i64: 1, 128>}, {pipeline_mode = #tpu.pipeline_mode<synchronous>, transform_indices = @transform_7, window_bounds = array<i64: 128, 2>}, {transform_indices = @transform_8, window_bounds = array<i64: 1, 1, 2>}]} {
    %c0_i32 = arith.constant 0 : i32
    %0 = arith.cmpi eq, %arg1, %c0_i32 : i32
    %1 = arith.extui %0 : i1 to i32
    %c0_i32_0 = arith.constant 0 : i32
    %2 = arith.cmpi ne, %1, %c0_i32_0 : i32
    scf.if %2 {
      %cst_30 = arith.constant 0.000000e+00 : f32
      %44 = vector.broadcast %cst_30 : f32 to vector<1x2xf32>
      %c0_31 = arith.constant 0 : index
      %c0_32 = arith.constant 0 : index
      %45 = vector.load %arg11[%c0_31, %c0_32] : memref<1x2xf32, #tpu.memory_space<vmem>>, vector<1x2xf32>
      tpu.vector_store %arg11[%c0_31, %c0_32], %44 {strides = array<i32>} : memref<1x2xf32, #tpu.memory_space<vmem>>, vector<1x2xf32>,
    } else {
    }
    %c0 = arith.constant 0 : index
    %c0_1 = arith.constant 0 : index
    %3 = vector.load %arg2[%c0, %c0_1] : memref<16x32xbf16, #tpu.memory_space<vmem>>, vector<16x32xbf16>
    %c0_2 = arith.constant 0 : index
    %c0_3 = arith.constant 0 : index
    %4 = vector.load %arg5[%c0_2, %c0_3] : memref<32x128xbf16, #tpu.memory_space<vmem>>, vector<32x128xbf16>
    %cst = arith.constant dense<0.000000e+00> : vector<16x128xf32>
    %5 = tpu.matmul %3, %4, %cst {dimension_numbers = #tpu.dot_dimension_numbers<[1], [0], [0], [1], [0, 0, 1, 1], [], []>} : vector<16x32xbf16>, vector<32x128xbf16>, vector<16x128xf32> -> vector<16x128xf32>
    %c0_4 = arith.constant 0 : index
    %c0_5 = arith.constant 0 : index
    %6 = vector.load %arg3[%c0_4, %c0_5] : memref<16x128xbf16, #tpu.memory_space<vmem>>, vector<16x128xbf16>
    %c0_6 = arith.constant 0 : index
    %c0_7 = arith.constant 0 : index
    %7 = vector.load %arg6[%c0_6, %c0_7] : memref<128x128xbf16, #tpu.memory_space<vmem>>, vector<128x128xbf16>
    %cst_8 = arith.constant dense<0.000000e+00> : vector<16x128xf32>
    %8 = tpu.matmul %6, %7, %cst_8 {dimension_numbers = #tpu.dot_dimension_numbers<[1], [0], [0], [1], [0, 0, 1, 1], [], []>} : vector<16x128xbf16>, vector<128x128xbf16>, vector<16x128xf32> -> vector<16x128xf32>
    %9 = arith.addf %5, %8 : vector<16x128xf32>
    %c0_9 = arith.constant 0 : index
    %c0_10 = arith.constant 0 : index
    %10 = vector.load %arg4[%c0_9, %c0_10] : memref<16x4xbf16, #tpu.memory_space<vmem>>, vector<16x4xbf16>
    %c0_11 = arith.constant 0 : index
    %c0_12 = arith.constant 0 : index
    %11 = vector.load %arg7[%c0_11, %c0_12] : memref<4x128xbf16, #tpu.memory_space<vmem>>, vector<4x128xbf16>
    %cst_13 = arith.constant dense<0.000000e+00> : vector<16x128xf32>
    %12 = tpu.matmul %10, %11, %cst_13 {dimension_numbers = #tpu.dot_dimension_numbers<[1], [0], [0], [1], [0, 0, 1, 1], [], []>} : vector<16x4xbf16>, vector<4x128xbf16>, vector<16x128xf32> -> vector<16x128xf32>
    %13 = arith.addf %9, %12 : vector<16x128xf32>
    %c0_14 = arith.constant 0 : index
    %c0_15 = arith.constant 0 : index
    %14 = vector.load %arg8[%c0_14, %c0_15] : memref<1x128xf32, #tpu.memory_space<vmem>>, vector<1x128xf32>
    %15 = vector.broadcast %14 : vector<1x128xf32> to vector<16x128xf32>
    %16 = arith.addf %13, %15 : vector<16x128xf32>
    %cst_16 = arith.constant 0.000000e+00 : f32
    %17 = vector.broadcast %cst_16 : f32 to vector<16x128xf32>
    %18 = arith.maximumf %16, %17 : vector<16x128xf32>
    %c0_17 = arith.constant 0 : index
    %c0_18 = arith.constant 0 : index
    %19 = vector.load %arg9[%c0_17, %c0_18] : memref<128x2xf32, #tpu.memory_space<vmem>>, vector<128x2xf32>
    %cst_19 = arith.constant dense<0.000000e+00> : vector<16x2xf32>
    %20 = tpu.matmul %18, %19, %cst_19 {dimension_numbers = #tpu.dot_dimension_numbers<[1], [0], [0], [1], [0, 0, 1, 1], [], []>} : vector<16x128xf32>, vector<128x2xf32>, vector<16x2xf32> -> vector<16x2xf32>
    %cst_20 = arith.constant 2.000000e+01 : f32
    %21 = vector.broadcast %cst_20 : f32 to vector<16x2xf32>
    %22 = arith.cmpf ogt, %20, %21 : vector<16x2xf32>
    %cst_21 = arith.constant 2.000000e+01 : f32
    %23 = vector.broadcast %cst_21 : f32 to vector<16x2xf32>
    %24 = arith.minimumf %20, %23 : vector<16x2xf32>
    %25 = math.exp %24 : vector<16x2xf32>
    %26 = math.log1p %25 : vector<16x2xf32>
    %27 = arith.select %22, %20, %26 : vector<16x2xi1>, vector<16x2xf32>
    %c1_i32 = arith.constant 1 : i32
    %28 = arith.muli %arg0, %c1_i32 : i32
    %29 = arith.addi %28, %arg1 : i32
    %c16_i32 = arith.constant 16 : i32
    %30 = arith.muli %29, %c16_i32 : i32
    %cst_22 = arith.constant dense<0.000000e+00> : vector<2xf32>
    %31 = vector.multi_reduction <add>, %27, %cst_22 [0] : vector<16x2xf32> to vector<2xf32>
    %32 = vector.shape_cast %31 : vector<2xf32> to vector<1x2xf32>
    %c16_i32_23 = arith.constant 16 : i32
    %33 = arith.addi %30, %c16_i32_23 : i32
    %c8_i32 = arith.constant 8 : i32
    %34 = arith.cmpi sle, %33, %c8_i32 : i32
    %35 = arith.extui %34 : i1 to i32
    %c0_i32_24 = arith.constant 0 : i32
    %36 = arith.cmpi ne, %35, %c0_i32_24 : i32
    scf.if %36 {
      %c0_30 = arith.constant 0 : index
      %c0_31 = arith.constant 0 : index
      %44 = vector.load %arg11[%c0_30, %c0_31] : memref<1x2xf32, #tpu.memory_space<vmem>>, vector<1x2xf32>
      %45 = arith.addf %44, %32 : vector<1x2xf32>
      %c0_32 = arith.constant 0 : index
      %c0_33 = arith.constant 0 : index
      %46 = vector.load %arg11[%c0_32, %c0_33] : memref<1x2xf32, #tpu.memory_space<vmem>>, vector<1x2xf32>
      tpu.vector_store %arg11[%c0_32, %c0_33], %45 {strides = array<i32>} : memref<1x2xf32, #tpu.memory_space<vmem>>, vector<1x2xf32>,
    } else {
    }
    %c16_i32_25 = arith.constant 16 : i32
    %37 = arith.addi %30, %c16_i32_25 : i32
    %c8_i32_26 = arith.constant 8 : i32
    %38 = arith.cmpi sgt, %37, %c8_i32_26 : i32
    %39 = arith.extui %38 : i1 to i32
    %c0_i32_27 = arith.constant 0 : i32
    %40 = arith.cmpi ne, %39, %c0_i32_27 : i32
    scf.if %40 {
      %44 = tpu.iota {dimensions = array<i32: 0>} : vector<16x1xi32>
      %45 = vector.broadcast %30 : i32 to vector<16x1xi32>
      %46 = arith.addi %45, %44 : vector<16x1xi32>
      %c8_i32_30 = arith.constant 8 : i32
      %47 = vector.broadcast %c8_i32_30 : i32 to vector<16x1xi32>
      %48 = arith.cmpi slt, %46, %47 : vector<16x1xi32>
      %cst_31 = arith.constant 0.000000e+00 : f32
      %49 = vector.shape_cast %48 : vector<16x1xi1> to vector<16x1xi1>
      %50 = vector.broadcast %49 : vector<16x1xi1> to vector<16x2xi1>
      %51 = vector.broadcast %cst_31 : f32 to vector<16x2xf32>
      %52 = arith.select %50, %27, %51 : vector<16x2xi1>, vector<16x2xf32>
      %c0_32 = arith.constant 0 : index
      %c0_33 = arith.constant 0 : index
      %53 = vector.load %arg11[%c0_32, %c0_33] : memref<1x2xf32, #tpu.memory_space<vmem>>, vector<1x2xf32>
      %cst_34 = arith.constant dense<0.000000e+00> : vector<2xf32>
      %54 = vector.multi_reduction <add>, %52, %cst_34 [0] : vector<16x2xf32> to vector<2xf32>
      %55 = vector.shape_cast %54 : vector<2xf32> to vector<1x2xf32>
      %56 = arith.addf %53, %55 : vector<1x2xf32>
      %c0_35 = arith.constant 0 : index
      %c0_36 = arith.constant 0 : index
      %57 = vector.load %arg11[%c0_35, %c0_36] : memref<1x2xf32, #tpu.memory_space<vmem>>, vector<1x2xf32>
      tpu.vector_store %arg11[%c0_35, %c0_36], %56 {strides = array<i32>} : memref<1x2xf32, #tpu.memory_space<vmem>>, vector<1x2xf32>,
    } else {
    }
    %c0_i32_28 = arith.constant 0 : i32
    %41 = arith.cmpi eq, %arg1, %c0_i32_28 : i32
    %42 = arith.extui %41 : i1 to i32
    %c0_i32_29 = arith.constant 0 : i32
    %43 = arith.cmpi ne, %42, %c0_i32_29 : i32
    scf.if %43 {
      %c0_30 = arith.constant 0 : index
      %c0_31 = arith.constant 0 : index
      %44 = vector.load %arg11[%c0_30, %c0_31] : memref<1x2xf32, #tpu.memory_space<vmem>>, vector<1x2xf32>
      %c0_32 = arith.constant 0 : index
      %c0_33 = arith.constant 0 : index
      %c0_34 = arith.constant 0 : index
      %45 = vector.load %arg10[%c0_32, %c0_33, %c0_34] : memref<1x1x2xf32, #tpu.memory_space<vmem>>, vector<1x1x2xf32>
      %46 = vector.shape_cast %45 : vector<1x1x2xf32> to vector<1x2xf32>
      %47 = vector.shape_cast %44 : vector<1x2xf32> to vector<1x1x2xf32>
      tpu.vector_store %arg10[%c0_32, %c0_33, %c0_34], %47 {strides = array<i32>} : memref<1x1x2xf32, #tpu.memory_space<vmem>>, vector<1x1x2xf32>,
    } else {
    }
    return
  }
  func.func @transform_0(%arg0: i32, %arg1: i32) -> (i32, i32) {
    %c1_i32 = arith.constant 1 : i32
    %0 = arith.muli %arg0, %c1_i32 : i32
    %1 = arith.addi %0, %arg1 : i32
    %c0_i32 = arith.constant 0 : i32
    %c0_i32_0 = arith.constant 0 : i32
    return %1, %c0_i32 : i32, i32
  }
  func.func @transform_1(%arg0: i32, %arg1: i32) -> (i32, i32) {
    %c1_i32 = arith.constant 1 : i32
    %0 = arith.muli %arg0, %c1_i32 : i32
    %1 = arith.addi %0, %arg1 : i32
    %c0_i32 = arith.constant 0 : i32
    %c0_i32_0 = arith.constant 0 : i32
    return %1, %c0_i32 : i32, i32
  }
  func.func @transform_2(%arg0: i32, %arg1: i32) -> (i32, i32) {
    %c1_i32 = arith.constant 1 : i32
    %0 = arith.muli %arg0, %c1_i32 : i32
    %1 = arith.addi %0, %arg1 : i32
    %c0_i32 = arith.constant 0 : i32
    %c0_i32_0 = arith.constant 0 : i32
    return %1, %c0_i32 : i32, i32
  }
  func.func @transform_3(%arg0: i32, %arg1: i32) -> (i32, i32) {
    %c0_i32 = arith.constant 0 : i32
    %c0_i32_0 = arith.constant 0 : i32
    %c0_i32_1 = arith.constant 0 : i32
    return %c0_i32, %c0_i32_0 : i32, i32
  }
  func.func @transform_4(%arg0: i32, %arg1: i32) -> (i32, i32) {
    %c0_i32 = arith.constant 0 : i32
    %c0_i32_0 = arith.constant 0 : i32
    %c0_i32_1 = arith.constant 0 : i32
    return %c0_i32, %c0_i32_0 : i32, i32
  }
  func.func @transform_5(%arg0: i32, %arg1: i32) -> (i32, i32) {
    %c0_i32 = arith.constant 0 : i32
    %c0_i32_0 = arith.constant 0 : i32
    %c0_i32_1 = arith.constant 0 : i32
    return %c0_i32, %c0_i32_0 : i32, i32
  }
  func.func @transform_6(%arg0: i32, %arg1: i32) -> (i32, i32) {
    %c0_i32 = arith.constant 0 : i32
    %c0_i32_0 = arith.constant 0 : i32
    %c0_i32_1 = arith.constant 0 : i32
    return %c0_i32, %c0_i32_0 : i32, i32
  }
  func.func @transform_7(%arg0: i32, %arg1: i32) -> (i32, i32) {
    %c0_i32 = arith.constant 0 : i32
    %c0_i32_0 = arith.constant 0 : i32
    %c0_i32_1 = arith.constant 0 : i32
    return %c0_i32, %c0_i32_0 : i32, i32
  }
  func.func @transform_8(%arg0: i32, %arg1: i32) -> (i32, i32, i32) {
    %c0_i32 = arith.constant 0 : i32
    %c0_i32_0 = arith.constant 0 : i32
    %c0_i32_1 = arith.constant 0 : i32
    return %arg0, %c0_i32, %c0_i32_0 : i32, i32, i32
  }
}

</mosaic_0001>

<llo_original>
// kernel: _policy_forward.1
$region0: #{_policy_forward.1}
  #allocation0 [shape = 'u32[]', space=smem, size = 0x4, offset = 0x4, fixed_abs, tag = 'smem constant byte address 0x4 - core index']
  #allocation1 [shape = 'u32[144,128]{1,0:T(1,128)}', space=vmem, size = 0x12000, scoped, tag = 'internal scratch']
  #allocation2 [shape = 'f32[1,2]{1,0:T(1,128)}', space=vmem, size = 0x200, scoped, tag = 'scratch operand']
  %s0 = inlined_call_operand.vmem [shape: bf16[16,32], index: 0, kind: input, shape index: {}]
  %s1 = inlined_call_operand.vmem [shape: bf16[16,128], index: 1, kind: input, shape index: {}]
  %s2 = inlined_call_operand.vmem [shape: bf16[16,4], index: 2, kind: input, shape index: {}]
  %s3 = inlined_call_operand.vmem [shape: bf16[32,128], index: 3, kind: input, shape index: {}]
  %s4 = inlined_call_operand.vmem [shape: bf16[128,128], index: 4, kind: input, shape index: {}]
  %s5 = inlined_call_operand.vmem [shape: bf16[4,128], index: 5, kind: input, shape index: {}]
  %s6 = inlined_call_operand.vmem [shape: f32[1,128], index: 6, kind: input, shape index: {}]
  %s7 = inlined_call_operand.vmem [shape: f32[128,2], index: 7, kind: input, shape index: {}]
  %s8 = inlined_call_operand.vmem [shape: f32[1,1,2], index: 8, kind: output, shape index: {}]
  %s9 = sld [smem:[#allocation0]]
  $region58: #{_policy_forward.1} parent=0
    _
  %s11 = ssub.s32 1, %s9
  %s12 = scalar_select 0, %s11, %s9
  // Predicated region
  $region2: #{_policy_forward.1} parent=0 // pred_check
    _
  $region3: #{_policy_forward.1} parent=0 // pred_check_branch
    %14 = sbr.rel (0) target = $region5
  $region4: #{_policy_forward.1} parent=0 // pred_region
    %s15 = sadd.s32 0, 0
    %s16 = smul.u32 2, %s15
    %p17 = scmp.lt.s32.totalorder %s16, 1
    %s18 = scalar_select %p17, %s16, 1
    %s19 = smul.addr %s18, 4
    %s20 = scalar_lea.vmem %s0, %s19
    %s21 = sadd.s32 0, 0
    %s22 = smul.u32 2, %s21
  $region5: #{_policy_forward.1} parent=0 // pred_fallthru
    _
  // Predicated region
  $region6: #{_policy_forward.1} parent=0 // pred_check
    _
  $region7: #{_policy_forward.1} parent=0 // pred_check_branch
    %24 = sbr.rel (0) target = $region9
  $region8: #{_policy_forward.1} parent=0 // pred_region
    %s25 = sadd.s32 0, 0
    %s26 = smul.u32 2, %s25
    %p27 = scmp.lt.s32.totalorder %s26, 1
    %s28 = scalar_select %p27, %s26, 1
    %s29 = smul.addr %s28, 4
    %s30 = scalar_lea.vmem %s1, %s29
    %s31 = sadd.s32 0, 0
    %s32 = smul.u32 2, %s31
  $region9: #{_policy_forward.1} parent=0 // pred_fallthru
    _
  // Predicated region
  $region10: #{_policy_forward.1} parent=0 // pred_check
    _
  $region11: #{_policy_forward.1} parent=0 // pred_check_branch
    %34 = sbr.rel (0) target = $region13
  $region12: #{_policy_forward.1} parent=0 // pred_region
    %s35 = sadd.s32 0, 0
    %s36 = smul.u32 2, %s35
    %p37 = scmp.lt.s32.totalorder %s36, 1
    %s38 = scalar_select %p37, %s36, 1
    %s39 = smul.addr %s38, 4
    %s40 = scalar_lea.vmem %s2, %s39
    %s41 = sadd.s32 0, 0
    %s42 = smul.u32 2, %s41
  $region13: #{_policy_forward.1} parent=0 // pred_fallthru
    _
  // Predicated region
  $region14: #{_policy_forward.1} parent=0 // pred_check
    _
  $region15: #{_policy_forward.1} parent=0 // pred_check_branch
    %44 = sbr.rel (0) target = $region17
  $region16: #{_policy_forward.1} parent=0 // pred_region
    _
  $region17: #{_policy_forward.1} parent=0 // pred_fallthru
    _
  // Predicated region
  $region18: #{_policy_forward.1} parent=0 // pred_check
    _
  $region19: #{_policy_forward.1} parent=0 // pred_check_branch
    %46 = sbr.rel (0) target = $region21
  $region20: #{_policy_forward.1} parent=0 // pred_region
    _
  $region21: #{_policy_forward.1} parent=0 // pred_fallthru
    _
  // Predicated region
  $region22: #{_policy_forward.1} parent=0 // pred_check
    _
  $region23: #{_policy_forward.1} parent=0 // pred_check_branch
    %48 = sbr.rel (0) target = $region25
  $region24: #{_policy_forward.1} parent=0 // pred_region
    _
  $region25: #{_policy_forward.1} parent=0 // pred_fallthru
    _
  // Predicated region
  $region26: #{_policy_forward.1} parent=0 // pred_check
    _
  $region27: #{_policy_forward.1} parent=0 // pred_check_branch
    %50 = sbr.rel (0) target = $region29
  $region28: #{_policy_forward.1} parent=0 // pred_region
    _
  $region29: #{_policy_forward.1} parent=0 // pred_fallthru
    _
  // Predicated region
  $region30: #{_policy_forward.1} parent=0 // pred_check
    _
  $region31: #{_policy_forward.1} parent=0 // pred_check_branch
    %52 = sbr.rel (0) target = $region33
  $region32: #{_policy_forward.1} parent=0 // pred_region
    _
  $region33: #{_policy_forward.1} parent=0 // pred_fallthru
    _
  %s53 = sadd.s32 0, 0
  %s54 = smul.u32 2, %s53
  %p55 = scmp.lt.s32.totalorder %s54, 1
  %s56 = scalar_select %p55, %s54, 1
  %s57 = smul.addr %s56, 4
  %s58 = scalar_lea.vmem %s0, %s57
  %s59 = sadd.s32 0, 0
  %s60 = smul.u32 2, %s59
  %p61 = scmp.lt.s32.totalorder %s60, 1
  %s62 = scalar_select %p61, %s60, 1
  %s63 = smul.addr %s62, 4
  %s64 = scalar_lea.vmem %s1, %s63
  %s65 = sadd.s32 0, 0
  %s66 = smul.u32 2, %s65
  %p67 = scmp.lt.s32.totalorder %s66, 1
  %s68 = scalar_select %p67, %s66, 1
  %s69 = smul.addr %s68, 4
  %s70 = scalar_lea.vmem %s2, %s69
  %s71 = sadd.s32 0, 0
  %s72 = smul.u32 2, %s71
  %p73 = scmp.lt.s32.totalorder %s72, 1
  %s74 = scalar_select %p73, %s72, 1
  %s75 = smul.addr %s74, 4
  %s76 = scalar_lea.vmem %s0, %s75
  %s77 = sadd.s32 0, 0
  %s78 = smul.u32 2, %s77
  %s79 = sadd.s32 0, 0
  %s80 = smul.u32 2, %s79
  %p81 = scmp.lt.s32.totalorder %s80, 1
  %s82 = scalar_select %p81, %s80, 1
  %s83 = smul.addr %s82, 4
  %s84 = scalar_lea.vmem %s1, %s83
  %s85 = sadd.s32 0, 0
  %s86 = smul.u32 2, %s85
  %s87 = sadd.s32 0, 0
  %s88 = smul.u32 2, %s87
  %p89 = scmp.lt.s32.totalorder %s88, 1
  %s90 = scalar_select %p89, %s88, 1
  %s91 = smul.addr %s90, 4
  %s92 = scalar_lea.vmem %s2, %s91
  %s93 = sadd.s32 0, 0
  %s94 = smul.u32 2, %s93
  %p96 = scmp.eq.s32.totalorder 0, 0
  // Predicated region
  $region34: #{_policy_forward.1} parent=0 // pred_check
    %p97 = pneg %p96
  $region35: #{_policy_forward.1} parent=0 // pred_check_branch
    %99 = sbr.rel (%p97) target = $region37
  $region36: #{_policy_forward.1} parent=0 // pred_region
    %vm100 = vcmask 8192
    %101 = vst.msk [vmem:[#allocation2] sm:$0x1] %vm100, 0.0
  $region37: #{_policy_forward.1} parent=0 // pred_fallthru
    _
  %v102 = vld [vmem:[%s76] sm:$0xf]
  %v103 = vld [vmem:[%s76 + $0x4] sm:$0xf]
  %v104 = vld [vmem:[%s3] sm:$0xf]
  %v105 = vld [vmem:[%s3 + $0x4] sm:$0xf]
  %v106 = vld [vmem:[%s3 + $0x8] sm:$0xf]
  %v107 = vld [vmem:[%s3 + $0xc] sm:$0xf]
  %v108 = vld [vmem:[%s84] sm:$0xf]
  %v109 = vld [vmem:[%s84 + $0x4] sm:$0xf]
  %v110 = vld [vmem:[%s4] sm:$0xf]
  %v111 = vld [vmem:[%s4 + $0x4] sm:$0xf]
  %v112 = vld [vmem:[%s4 + $0x8] sm:$0xf]
  %v113 = vld [vmem:[%s4 + $0xc] sm:$0xf]
  %v114 = vld [vmem:[%s4 + $0x10] sm:$0xf]
  %v115 = vld [vmem:[%s4 + $0x14] sm:$0xf]
  %v116 = vld [vmem:[%s4 + $0x18] sm:$0xf]
  %v117 = vld [vmem:[%s4 + $0x1c] sm:$0xf]
  %v118 = vld [vmem:[%s4 + $0x20] sm:$0xf]
  %v119 = vld [vmem:[%s4 + $0x24] sm:$0xf]
  %v120 = vld [vmem:[%s4 + $0x28] sm:$0xf]
  %v121 = vld [vmem:[%s4 + $0x2c] sm:$0xf]
  %v122 = vld [vmem:[%s4 + $0x30] sm:$0xf]
  %v123 = vld [vmem:[%s4 + $0x34] sm:$0xf]
  %v124 = vld [vmem:[%s4 + $0x38] sm:$0xf]
  %v125 = vld [vmem:[%s4 + $0x3c] sm:$0xf]
  %v128 = vunpack.c.l.b16 %v108
  %v129 = vunpack.c.l.b16 %v109
  %v130 = vpack.c.b16 %v129, %v128
  %v148 = vunpack.c.l.b16 %v110
  %v149 = vunpack.c.l.b16 %v111
  %v150 = vunpack.c.l.b16 %v112
  %v151 = vunpack.c.l.b16 %v113
  %v152 = vunpack.c.l.b16 %v114
  %v153 = vunpack.c.l.b16 %v115
  %v154 = vunpack.c.l.b16 %v116
  %v155 = vunpack.c.l.b16 %v117
  %v156 = vunpack.c.l.b16 %v118
  %v157 = vunpack.c.l.b16 %v119
  %v158 = vunpack.c.l.b16 %v120
  %v159 = vunpack.c.l.b16 %v121
  %v160 = vunpack.c.l.b16 %v122
  %v161 = vunpack.c.l.b16 %v123
  %v162 = vunpack.c.l.b16 %v124
  %v163 = vunpack.c.l.b16 %v125
  %v164 = vpack.c.b16 %v149, %v148
  %v165 = vpack.c.b16 %v151, %v150
  %v166 = vpack.c.b16 %v153, %v152
  %v167 = vpack.c.b16 %v155, %v154
  %v168 = vpack.c.b16 %v157, %v156
  %v169 = vpack.c.b16 %v159, %v158
  %v170 = vpack.c.b16 %v161, %v160
  %v171 = vpack.c.b16 %v163, %v162
  %180 = vmatprep.subr.bf16.mxu0 0
  %181 = vmatpush1.bf16.msra.mxu0 %v164
  %182 = vmatprep.subr.bf16.mxu0 0
  %183 = vmatpush1.bf16.msra.mxu0 %v165
  %184 = vmatprep.subr.bf16.mxu0 0
  %185 = vmatpush1.bf16.msra.mxu0 %v166
  %186 = vmatprep.subr.bf16.mxu0 0
  %187 = vmatpush1.bf16.msra.mxu0 %v167
  %188 = vmatprep.subr.bf16.mxu0 0
  %189 = vmatpush1.bf16.msra.mxu0 %v168
  %190 = vmatprep.subr.bf16.mxu0 0
  %191 = vmatpush1.bf16.msra.mxu0 %v169
  %192 = vmatprep.subr.bf16.mxu0 0
  %193 = vmatpush1.bf16.msra.mxu0 %v170
  %194 = vmatprep.subr.bf16.mxu0 0
  %195 = vmatpush1.bf16.msra.mxu0 %v171
  %196 = vmatprep.subr.bf16.mxu0 0
  %197 = vmatpush1.bf16.msra.mxu0 0
  %198 = vmatprep.subr.bf16.mxu0 0
  %199 = vmatpush1.bf16.msra.mxu0 0
  %200 = vmatprep.subr.bf16.mxu0 0
  %201 = vmatpush1.bf16.msra.mxu0 0
  %202 = vmatprep.subr.bf16.mxu0 0
  %203 = vmatpush1.bf16.msra.mxu0 0
  %204 = vmatprep.subr.bf16.mxu0 0
  %205 = vmatpush1.bf16.msra.mxu0 0
  %206 = vmatprep.subr.bf16.mxu0 0
  %207 = vmatpush1.bf16.msra.mxu0 0
  %208 = vmatprep.subr.bf16.mxu0 0
  %209 = vmatpush1.bf16.msra.mxu0 0
  %210 = vmatprep.subr.bf16.mxu0 0
  %211 = vmatpush1.bf16.msra.mxu0 0
  %212 = vmatprep.mubr.bf16.mxu0 0
  %213 = vmatmul.mubr.bf16.gmra.mrb[0].mxu0 %v130
  %v214 = vpop.f32.mrb[0].mxu0
  %v215 = vadd.f32 0.0, %v214
  %v216 = vpop.f32.mrb[0].mxu0
  %v217 = vpop.f32.mrb[0].mxu0
  %v218 = vadd.f32 0.0, %v217
  %v219 = vpop.f32.mrb[0].mxu0
  %220 = vdwg.mxu0
  %v223 = vunpack.c.l.b16 %v102
  %v224 = vunpack.c.l.b16 %v103
  %v225 = vpack.c.b16 %v224, %v223
  %v230 = vunpack.c.l.b16 %v104
  %v231 = vunpack.c.l.b16 %v105
  %v232 = vunpack.c.l.b16 %v106
  %v233 = vunpack.c.l.b16 %v107
  %v234 = vpack.c.b16 %v231, %v230
  %v235 = vpack.c.b16 %v233, %v232
  %vm238 = vcmask 261120
  %v240 = vsel %vm238, %v225, 0
  %242 = vmatprep.subr.bf16.mxu0 0
  %243 = vmatpush1.bf16.msra.mxu0 %v234
  %244 = vmatprep.subr.bf16.mxu0 0
  %245 = vmatpush1.bf16.msra.mxu0 %v235
  %246 = vmatprep.subr.bf16.mxu0 0
  %247 = vmatpush1.bf16.msra.mxu0 0
  %248 = vmatprep.subr.bf16.mxu0 0
  %249 = vmatpush1.bf16.msra.mxu0 0
  %250 = vmatprep.subr.bf16.mxu0 0
  %251 = vmatpush1.bf16.msra.mxu0 0
  %252 = vmatprep.subr.bf16.mxu0 0
  %253 = vmatpush1.bf16.msra.mxu0 0
  %254 = vmatprep.subr.bf16.mxu0 0
  %255 = vmatpush1.bf16.msra.mxu0 0
  %256 = vmatprep.subr.bf16.mxu0 0
  %257 = vmatpush1.bf16.msra.mxu0 0
  %258 = vmatprep.subr.bf16.mxu0 0
  %259 = vmatpush1.bf16.msra.mxu0 0
  %260 = vmatprep.subr.bf16.mxu0 0
  %261 = vmatpush1.bf16.msra.mxu0 0
  %262 = vmatprep.subr.bf16.mxu0 0
  %263 = vmatpush1.bf16.msra.mxu0 0
  %264 = vmatprep.subr.bf16.mxu0 0
  %265 = vmatpush1.bf16.msra.mxu0 0
  %266 = vmatprep.subr.bf16.mxu0 0
  %267 = vmatpush1.bf16.msra.mxu0 0
  %268 = vmatprep.subr.bf16.mxu0 0
  %269 = vmatpush1.bf16.msra.mxu0 0
  %270 = vmatprep.subr.bf16.mxu0 0
  %271 = vmatpush1.bf16.msra.mxu0 0
  %272 = vmatprep.subr.bf16.mxu0 0
  %273 = vmatpush1.bf16.msra.mxu0 0
  %274 = vmatprep.mubr.bf16.mxu0 0
  %275 = vmatmul.mubr.bf16.gmra.mrb[0].mxu0 %v240
  %v276 = vpop.f32.mrb[0].mxu0
  %v277 = vadd.f32 %v215, %v276
  %v278 = vpop.f32.mrb[0].mxu0
  %v279 = vpop.f32.mrb[0].mxu0
  %v280 = vadd.f32 %v218, %v279
  %v281 = vpop.f32.mrb[0].mxu0
  %282 = vdwg.mxu0
  %v283 = vld [vmem:[%s92] sm:$0xf]
  %v284 = vld [vmem:[%s92 + $0x4] sm:$0xf]
  %v285 = vld [vmem:[%s5] sm:$0x3]
  %v288 = vunpack.c.l.b16 %v283
  %v289 = vunpack.c.l.b16 %v284
  %v290 = vpack.c.b16 %v289, %v288
  %vm291 = vcmask 31744
  %v293 = vsel %vm291, %v290, 0
  %vm295 = vcmask 1041408
  %v297 = vsel %vm295, %v285, 0
  %299 = vmatprep.subr.bf16.mxu0 0
  %300 = vmatpush1.bf16.msra.mxu0 %v297
  %301 = vmatprep.subr.bf16.mxu0 0
  %302 = vmatpush1.bf16.msra.mxu0 0
  %303 = vmatprep.subr.bf16.mxu0 0
  %304 = vmatpush1.bf16.msra.mxu0 0
  %305 = vmatprep.subr.bf16.mxu0 0
  %306 = vmatpush1.bf16.msra.mxu0 0
  %307 = vmatprep.subr.bf16.mxu0 0
  %308 = vmatpush1.bf16.msra.mxu0 0
  %309 = vmatprep.subr.bf16.mxu0 0
  %310 = vmatpush1.bf16.msra.mxu0 0
  %311 = vmatprep.subr.bf16.mxu0 0
  %312 = vmatpush1.bf16.msra.mxu0 0
  %313 = vmatprep.subr.bf16.mxu0 0
  %314 = vmatpush1.bf16.msra.mxu0 0
  %315 = vmatprep.subr.bf16.mxu0 0
  %316 = vmatpush1.bf16.msra.mxu0 0
  %317 = vmatprep.subr.bf16.mxu0 0
  %318 = vmatpush1.bf16.msra.mxu0 0
  %319 = vmatprep.subr.bf16.mxu0 0
  %320 = vmatpush1.bf16.msra.mxu0 0
  %321 = vmatprep.subr.bf16.mxu0 0
  %322 = vmatpush1.bf16.msra.mxu0 0
  %323 = vmatprep.subr.bf16.mxu0 0
  %324 = vmatpush1.bf16.msra.mxu0 0
  %325 = vmatprep.subr.bf16.mxu0 0
  %326 = vmatpush1.bf16.msra.mxu0 0
  %327 = vmatprep.subr.bf16.mxu0 0
  %328 = vmatpush1.bf16.msra.mxu0 0
  %329 = vmatprep.subr.bf16.mxu0 0
  %330 = vmatpush1.bf16.msra.mxu0 0
  %331 = vmatprep.mubr.bf16.mxu0 0
  %332 = vmatmul.mubr.bf16.gmra.mrb[0].mxu0 %v293
  %v333 = vpop.f32.mrb[0].mxu0
  %v334 = vadd.f32 0.0, %v333
  %v335 = vpop.f32.mrb[0].mxu0
  %v336 = vpop.f32.mrb[0].mxu0
  %v337 = vadd.f32 0.0, %v336
  %v338 = vpop.f32.mrb[0].mxu0
  %339 = vdwg.mxu0
  %v340 = vadd.f32 %v277, %v334
  %v341 = vadd.f32 %v280, %v337
  %v342 = vld [vmem:[%s6] sm:$0x1]
  %v344 = vlaneseq
  %v345 = vshrl.u32 %v344, 7
  %v346 = vsub.s32 0, %v345
  %v347 = vrot.slane %v342, %v346
  %v349 = vadd.f32 %v340, %v347
  %v350 = vadd.f32 %v341, %v347
  %v351 = vmax.f32 %v349, 0.0
  %v352 = vmax.f32 %v350, 0.0
  %v353 = vld [vmem:[%s7] sm:$0xff]
  %v354 = vld [vmem:[%s7 + $0x8] sm:$0xff]
  %v355 = vld [vmem:[%s7 + $0x10] sm:$0xff]
  %v356 = vld [vmem:[%s7 + $0x18] sm:$0xff]
  %v357 = vld [vmem:[%s7 + $0x20] sm:$0xff]
  %v358 = vld [vmem:[%s7 + $0x28] sm:$0xff]
  %v359 = vld [vmem:[%s7 + $0x30] sm:$0xff]
  %v360 = vld [vmem:[%s7 + $0x38] sm:$0xff]
  %v361 = vld [vmem:[%s7 + $0x40] sm:$0xff]
  %v362 = vld [vmem:[%s7 + $0x48] sm:$0xff]
  %v363 = vld [vmem:[%s7 + $0x50] sm:$0xff]
  %v364 = vld [vmem:[%s7 + $0x58] sm:$0xff]
  %v365 = vld [vmem:[%s7 + $0x60] sm:$0xff]
  %v366 = vld [vmem:[%s7 + $0x68] sm:$0xff]
  %v367 = vld [vmem:[%s7 + $0x70] sm:$0xff]
  %v368 = vld [vmem:[%s7 + $0x78] sm:$0xff]
  %369 = vmatprep.subr.mxu0 0.0
  %370 = vmatpush1.msra.mxu0 %v353
  %371 = vmatprep.subr.mxu0 0.0
  %372 = vmatpush1.msra.mxu0 %v354
  %373 = vmatprep.subr.mxu0 0.0
  %374 = vmatpush1.msra.mxu0 %v355
  %375 = vmatprep.subr.mxu0 0.0
  %376 = vmatpush1.msra.mxu0 %v356
  %377 = vmatprep.subr.mxu0 0.0
  %378 = vmatpush1.msra.mxu0 %v357
  %379 = vmatprep.subr.mxu0 0.0
  %380 = vmatpush1.msra.mxu0 %v358
  %381 = vmatprep.subr.mxu0 0.0
  %382 = vmatpush1.msra.mxu0 %v359
  %383 = vmatprep.subr.mxu0 0.0
  %384 = vmatpush1.msra.mxu0 %v360
  %385 = vmatprep.subr.mxu0 0.0
  %386 = vmatpush1.msra.mxu0 %v361
  %387 = vmatprep.subr.mxu0 0.0
  %388 = vmatpush1.msra.mxu0 %v362
  %389 = vmatprep.subr.mxu0 0.0
  %390 = vmatpush1.msra.mxu0 %v363
  %391 = vmatprep.subr.mxu0 0.0
  %392 = vmatpush1.msra.mxu0 %v364
  %393 = vmatprep.subr.mxu0 0.0
  %394 = vmatpush1.msra.mxu0 %v365
  %395 = vmatprep.subr.mxu0 0.0
  %396 = vmatpush1.msra.mxu0 %v366
  %397 = vmatprep.subr.mxu0 0.0
  %398 = vmatpush1.msra.mxu0 %v367
  %399 = vmatprep.subr.mxu0 0.0
  %400 = vmatpush1.msra.mxu0 %v368
  %401 = vmatprep.subr.mxu0 0.0
  %402 = vmatpush1.msra.mxu0 0.0
  %403 = vmatprep.subr.mxu0 0.0
  %404 = vmatpush1.msra.mxu0 0.0
  %405 = vmatprep.subr.mxu0 0.0
  %406 = vmatpush1.msra.mxu0 0.0
  %407 = vmatprep.subr.mxu0 0.0
  %408 = vmatpush1.msra.mxu0 0.0
  %409 = vmatprep.subr.mxu0 0.0
  %410 = vmatpush1.msra.mxu0 0.0
  %411 = vmatprep.subr.mxu0 0.0
  %412 = vmatpush1.msra.mxu0 0.0
  %413 = vmatprep.subr.mxu0 0.0
  %414 = vmatpush1.msra.mxu0 0.0
  %415 = vmatprep.subr.mxu0 0.0
  %416 = vmatpush1.msra.mxu0 0.0
  %417 = vmatprep.subr.mxu0 0.0
  %418 = vmatpush1.msra.mxu0 0.0
  %419 = vmatprep.subr.mxu0 0.0
  %420 = vmatpush1.msra.mxu0 0.0
  %421 = vmatprep.subr.mxu0 0.0
  %422 = vmatpush1.msra.mxu0 0.0
  %423 = vmatprep.subr.mxu0 0.0
  %424 = vmatpush1.msra.mxu0 0.0
  %425 = vmatprep.subr.mxu0 0.0
  %426 = vmatpush1.msra.mxu0 0.0
  %427 = vmatprep.subr.mxu0 0.0
  %428 = vmatpush1.msra.mxu0 0.0
  %429 = vmatprep.subr.mxu0 0.0
  %430 = vmatpush1.msra.mxu0 0.0
  %431 = vmatprep.subr.mxu0 0.0
  %432 = vmatpush1.msra.mxu0 0.0
  %433 = vmatprep.mubr.f32.mxu0 0.0
  %434 = vmatmul.mubr.f32.gmra.mrb[0].mxu0 %v351
  %v435 = vpop.f32.mrb[0].mxu0
  %v436 = vadd.f32 0.0, %v435
  %v437 = vpop.f32.mrb[0].mxu0
  %438 = vmatprep.mubr.f32.mxu0 0.0
  %439 = vmatmul.mubr.f32.gmra.mrb[0].mxu0 %v352
  %v440 = vpop.f32.mrb[0].mxu0
  %v441 = vadd.f32 0.0, %v440
  %v442 = vpop.f32.mrb[0].mxu0
  %443 = vdwg.mxu0
  %vm444 = vcmp.gt.f32.partialorder %v436, 20.0
  %vm445 = vcmp.gt.f32.partialorder %v441, 20.0
  %v446 = vmin.f32 %v436, 20.0
  %v447 = vmin.f32 %v441, 20.0
  %v448 = vmul.f32 %v446, 1.442695
  %v449 = vpow.pop %v448
  %v450 = vmul.f32 %v447, 1.442695
  %v451 = vpow.pop %v450
  %v452 = vadd.f32 %v449, 1.0
  %v453 = vlog2.pop %v452
  %v454 = vmul.f32 %v453, 0.6931472
  %v455 = vmul.f32 -0.5, %v449
  %v456 = vadd.f32 %v455, 1.0
  %v457 = vmul.f32 %v456, %v449
  %v458 = vand.u32 2147483647, %v449
  %vm459 = vcmp.lt.f32.partialorder %v458, 0.0004427343
  %v460 = vsel %vm459, %v457, %v454
  %v461 = vadd.f32 %v451, 1.0
  %v462 = vlog2.pop %v461
  %v463 = vmul.f32 %v462, 0.6931472
  %v464 = vmul.f32 -0.5, %v451
  %v465 = vadd.f32 %v464, 1.0
  %v466 = vmul.f32 %v465, %v451
  %v467 = vand.u32 2147483647, %v451
  %vm468 = vcmp.lt.f32.partialorder %v467, 0.0004427343
  %v469 = vsel %vm468, %v466, %v463
  %v470 = vsel %vm444, %v436, %v460
  %v471 = vsel %vm445, %v441, %v469
  %s472 = sadd.s32 0, 0
  %s473 = smul.u32 %s472, 16
  %vm474 = vcmask 15360
  %v475 = vsel %vm474, %v470, 0.0
  %v476 = vsel %vm474, %v471, 0.0
  %v477 = vadd.f32 %v475, %v476
  %v478 = vrot.slane %v477, 4
  %v479 = vadd.f32 %v477, %v478
  %v480 = vrot.slane %v479, 2
  %v481 = vadd.f32 %v479, %v480
  %v482 = vrot.slane %v481, 1
  %v483 = vadd.f32 %v481, %v482
  %s484 = sadd.s32 %s473, 16
  %p485 = scmp.le.s32.totalorder %s484, 8
  // Predicated region
  $region38: #{_policy_forward.1} parent=0 // pred_check
    %p486 = pneg %p485
  $region39: #{_policy_forward.1} parent=0 // pred_check_branch
    %488 = sbr.rel (%p486) target = $region41
  $region40: #{_policy_forward.1} parent=0 // pred_region
    %v489 = vld [vmem:[#allocation2] sm:$0x1]
    %v490 = vadd.f32 %v489, %v483
    %vm491 = vcmask 8192
    %492 = vst.msk [vmem:[#allocation2] sm:$0x1] %vm491, %v490
  $region41: #{_policy_forward.1} parent=0 // pred_fallthru
    _
  %p493 = scmp.gt.s32.totalorder %s484, 8
  // Predicated region
  $region42: #{_policy_forward.1} parent=0 // pred_check
    %p494 = pneg %p493
  $region43: #{_policy_forward.1} parent=0 // pred_check_branch
    %496 = sbr.rel (%p494) target = $region45
  $region44: #{_policy_forward.1} parent=0 // pred_region
    %v497 = vlaneseq
    %v498 = vshrl.u32 %v497, 7
    %v499 = vadd.s32 %v498, 8
    %v500 = vstv %s473
    %v501 = vadd.s32 %v500, %v498
    %v502 = vadd.s32 %v500, %v499
    %vm503 = vcmp.lt.s32.totalorder %v501, 8
    %vm504 = vcmp.lt.s32.totalorder %v502, 8
    %v505 = vsel %vm503, 1, 0
    %v506 = vsel %vm504, 1, 0
    %vm507 = vcmp.eq.s32.totalorder %v505, 1
    %vm508 = vcmp.eq.s32.totalorder %v506, 1
    %v509 = vsel %vm507, %v470, 0.0
    %v510 = vsel %vm508, %v471, 0.0
    %v511 = vld [vmem:[#allocation2] sm:$0x1]
    %v512 = vsel %vm474, %v509, 0.0
    %v513 = vsel %vm474, %v510, 0.0
    %v514 = vadd.f32 %v512, %v513
    %v515 = vrot.slane %v514, 4
    %v516 = vadd.f32 %v514, %v515
    %v517 = vrot.slane %v516, 2
    %v518 = vadd.f32 %v516, %v517
    %v519 = vrot.slane %v518, 1
    %v520 = vadd.f32 %v518, %v519
    %v521 = vadd.f32 %v511, %v520
    %vm522 = vcmask 8192
    %523 = vst.msk [vmem:[#allocation2] sm:$0x1] %vm522, %v521
  $region45: #{_policy_forward.1} parent=0 // pred_fallthru
    _
  // Predicated region
  $region46: #{_policy_forward.1} parent=0 // pred_check
    %p524 = pneg %p96
  $region47: #{_policy_forward.1} parent=0 // pred_check_branch
    %526 = sbr.rel (%p524) target = $region49
  $region48: #{_policy_forward.1} parent=0 // pred_region
    %v527 = vld [vmem:[#allocation2] sm:$0x1]
    %vm528 = vcmask 8192
    %529 = vst.msk [vmem:[%s8] sm:$0x1] %vm528, %v527
  $region49: #{_policy_forward.1} parent=0 // pred_fallthru
    _
  // Predicated region
  $region50: #{_policy_forward.1} parent=0 // pred_check
    _
  $region51: #{_policy_forward.1} parent=0 // pred_check_branch
    %531 = sbr.rel (0) target = $region53
  $region52: #{_policy_forward.1} parent=0 // pred_region
    _
  $region53: #{_policy_forward.1} parent=0 // pred_fallthru
    _
  // Predicated region
  $region54: #{_policy_forward.1} parent=0 // pred_check
    _
  $region55: #{_policy_forward.1} parent=0 // pred_check_branch
    %533 = sbr.rel (0) target = $region57
  $region56: #{_policy_forward.1} parent=0 // pred_region
    _
  $region57: #{_policy_forward.1} parent=0 // pred_fallthru
    _

</llo_original>
